<compile_context>
chip_gen: v7x
topology: tpu7x:2x2x1
jax: 0.10.0
libtpu: 0.0.40
codegen_flags: <defaults>
</compile_context>

<pallas_src>
import functools

import jax
import jax.numpy as jnp
from jax.experimental import pallas as pl
from jax.experimental.pallas import tpu as pltpu


def _embedding_kernel(idx_ref, table_ref, out_ref, *, scale):
    # idx_ref:   (TOK_TILE, 1) int32     -- token ids for this tile
    # table_ref: (vocab, embed_dim)      -- full table, resident in VMEM (single copy)
    # out_ref:   (TOK_TILE, embed_dim)
    idx = idx_ref[...]                                    # (T, 1)
    tile_tokens = idx.shape[0]
    vocab_size = table_ref.shape[0]

    # 2-D iota over the vocab axis (TPU requires >= 2D iota).
    vocab_iota = jax.lax.broadcasted_iota(
        jnp.int32, (tile_tokens, vocab_size), dimension=1
    )
    # Fold sqrt(embed_dim) into the one-hot: the (T, V) "one-hot" carries the
    # scale so the MXU result is already scaled -- no (T, D) VPU multiply.
    onehot = jnp.where(idx == vocab_iota, scale, 0.0).astype(table_ref.dtype)

    out_ref[...] = jnp.dot(
        onehot, table_ref[...], preferred_element_type=jnp.float32
    ).astype(out_ref.dtype)


def embedding_forward(indices, table, *, tok_tile=512):
    """indices: (B, S) int; table: (vocab, embed_dim) f32 -> (B, S, embed_dim) f32."""
    B, S = indices.shape
    vocab_size, embed_dim = table.shape
    scale = float(embed_dim) ** 0.5

    n_tokens = B * S
    n8 = pl.cdiv(n_tokens, 8) * 8                 # 8-aligned (sublane) token count

    # Big tile for MXU / DMA-pipeline utilization, clamped to the actual work,
    # kept a multiple of 8.
    tok_tile = max(8, min(int(tok_tile), n8))
    tok_tile -= tok_tile % 8
    # Keep at least 2 grid steps when possible so the parallel token axis can
    # shard across both TensorCores on megacore parts (v7x).
    if tok_tile == n8 and n8 >= 16:
        tok_tile = ((n8 // 2 + 7) // 8) * 8

    n_pad = pl.cdiv(n_tokens, tok_tile) * tok_tile

    flat_idx = indices.reshape(-1, 1).astype(jnp.int32)
    if n_pad != n_tokens:
        # cheap pad (padded rows gather row 0 and are sliced off below)
        flat_idx = jnp.pad(flat_idx, ((0, n_pad - n_tokens), (0, 0)))

    # VMEM budget: resident table (single-buffered) + double-buffered idx/out
    # tiles + generous headroom for compiler-internal scratch.
    itemsize = jnp.dtype(table.dtype).itemsize
    table_bytes = vocab_size * embed_dim * itemsize
    out_tile_bytes = tok_tile * embed_dim * itemsize
    idx_tile_bytes = tok_tile * 4
    vmem_limit = table_bytes + 2 * (out_tile_bytes + idx_tile_bytes) + (8 << 20)
    vmem_limit = int(min(vmem_limit, 100 * 1024 * 1024))

    kernel = functools.partial(_embedding_kernel, scale=scale)

    cost = pl.CostEstimate(
        flops=2 * n_pad * vocab_size * embed_dim,
        transcendentals=0,
        bytes_accessed=table_bytes + n_pad * 4 + n_pad * embed_dim * itemsize,
    )

    out_flat = pl.pallas_call(
        kernel,
        out_shape=jax.ShapeDtypeStruct((n_pad, embed_dim), table.dtype),
        grid=(n_pad // tok_tile,),
        in_specs=[
            # token-id column, tiled over the token axis (pipelined)
            pl.BlockSpec((tok_tile, 1), lambda i: (i, 0)),
            # full embedding table, resident in VMEM once (not pipelined,
            # not double-buffered)
            pl.BlockSpec(memory_space=pltpu.MemorySpace.VMEM),
        ],
        out_specs=pl.BlockSpec((tok_tile, embed_dim), lambda i: (i, 0)),
        compiler_params=pltpu.CompilerParams(
            dimension_semantics=("parallel",),
            vmem_limit_bytes=vmem_limit,
        ),
        cost_estimate=cost,
    )(flat_idx, table)

    return out_flat[:n_tokens].reshape(B, S, embed_dim)


if __name__ == "__main__":
    # Small, deterministic config consistent with the module:
    vocab_size = 64
    embed_dim = 256          # module default
    B, S = 2, 8

    key = jax.random.PRNGKey(0)
    k_w, k_x = jax.random.split(key)

    # Deterministic "Embedding.weight" init (torch uses N(0,1); shape (vocab, embed_dim))
    weight = jax.random.normal(k_w, (vocab_size, embed_dim), dtype=jnp.float32)
    # Deterministic integer token ids, shape (B, S)
    X = jax.random.randint(k_x, (B, S), 0, vocab_size, dtype=jnp.int32)

    out = embedding_forward(X, weight)
    out = jax.block_until_ready(out)

    # lightweight correctness check against plain-JAX reference
    ref = weight[X] * (embed_dim ** 0.5)
    assert out.shape == (B, S, embed_dim)
    assert jnp.allclose(out, ref, atol=1e-4, rtol=1e-4)

    print("KERNEL_OK")
</pallas_src>

<mosaic_0001>
module attributes {stable_mosaic.version = 11 : i64} {
  func.func @_embedding_kernel(%arg0: i32, %arg1: memref<8x1xi32, #tpu.memory_space<vmem>>, %arg2: memref<64x256xf32, #tpu.memory_space<vmem>>, %arg3: memref<8x256xf32, #tpu.memory_space<vmem>>) attributes {dimension_semantics = [#tpu.dimension_semantics<parallel>], iteration_bounds = array<i64: 2>, scalar_prefetch = 0 : i64, scratch_operands = 0 : i64, tpu.core_type = #tpu.core_type<tc>, window_params = [{transform_indices = @transform_0, window_bounds = array<i64: 8, 1>}, {pipeline_mode = #tpu.pipeline_mode<synchronous>, transform_indices = @transform_1, window_bounds = array<i64: 64, 256>}, {transform_indices = @transform_2, window_bounds = array<i64: 8, 256>}]} {
    %c0 = arith.constant 0 : index
    %c0_0 = arith.constant 0 : index
    %0 = vector.load %arg1[%c0, %c0_0] : memref<8x1xi32, #tpu.memory_space<vmem>>, vector<8x1xi32>
    %1 = tpu.iota {dimensions = array<i32: 1>} : vector<8x64xi32>
    %2 = vector.broadcast %0 : vector<8x1xi32> to vector<8x64xi32>
    %3 = arith.cmpi eq, %2, %1 : vector<8x64xi32>
    %cst = arith.constant 1.600000e+01 : f32
    %cst_1 = arith.constant 0.000000e+00 : f32
    %4 = vector.broadcast %cst : f32 to vector<8x64xf32>
    %5 = vector.broadcast %cst_1 : f32 to vector<8x64xf32>
    %6 = arith.select %3, %4, %5 : vector<8x64xi1>, vector<8x64xf32>
    %c0_2 = arith.constant 0 : index
    %c0_3 = arith.constant 0 : index
    %7 = vector.load %arg2[%c0_2, %c0_3] : memref<64x256xf32, #tpu.memory_space<vmem>>, vector<64x256xf32>
    %cst_4 = arith.constant dense<0.000000e+00> : vector<8x256xf32>
    %8 = tpu.matmul %6, %7, %cst_4 {dimension_numbers = #tpu.dot_dimension_numbers<[1], [0], [0], [1], [0, 0, 1, 1], [], []>} : vector<8x64xf32>, vector<64x256xf32>, vector<8x256xf32> -> vector<8x256xf32>
    %c0_5 = arith.constant 0 : index
    %c0_6 = arith.constant 0 : index
    %9 = vector.load %arg3[%c0_5, %c0_6] : memref<8x256xf32, #tpu.memory_space<vmem>>, vector<8x256xf32>
    tpu.vector_store %arg3[%c0_5, %c0_6], %8 {strides = array<i32>} : memref<8x256xf32, #tpu.memory_space<vmem>>, vector<8x256xf32>,
    return
  }
  func.func @transform_0(%arg0: i32) -> (i32, i32) {
    %c0_i32 = arith.constant 0 : i32
    %c0_i32_0 = arith.constant 0 : i32
    return %arg0, %c0_i32 : i32, i32
  }
  func.func @transform_1(%arg0: i32) -> (i32, i32) {
    %c0_i32 = arith.constant 0 : i32
    %c0_i32_0 = arith.constant 0 : i32
    %c0_i32_1 = arith.constant 0 : i32
    return %c0_i32, %c0_i32_0 : i32, i32
  }
  func.func @transform_2(%arg0: i32) -> (i32, i32) {
    %c0_i32 = arith.constant 0 : i32
    %c0_i32_0 = arith.constant 0 : i32
    return %arg0, %c0_i32 : i32, i32
  }
}

</mosaic_0001>

<llo_original>
// kernel: tpu_custom_call.1
$region0: #{tpu_custom_call.1}
  #allocation0 [shape = 'u32[]', space=smem, size = 0x4, offset = 0x4, fixed_abs, tag = 'smem constant byte address 0x4 - core index']
  #allocation1 [shape = 'u32[144,128]{1,0:T(1,128)}', space=vmem, size = 0x12000, scoped, tag = 'internal scratch']
  %s0 = inlined_call_operand.vmem [shape: s32[16,1], index: 0, kind: input, shape index: {}]
  %s1 = inlined_call_operand.hbm [shape: f32[64,256], index: 1, kind: input, shape index: {}]
  %s2 = inlined_call_operand.hbm [shape: f32[16,256], index: 2, kind: output, shape index: {}]
  %s3 = sld [smem:[#allocation0]]
  $region45: #{tpu_custom_call.1} parent=0
    _
  %s5 = ssub.s32 1, %s3
  %s6 = scalar_select 0, %s5, %s3
  $region1: #{tpu_custom_call.1} parent=0
    #allocation2 [shape = 'u8[65536]{0}', space=vmem, size = 0x10000, scoped, tag = 'input window, operand 1, single buffered']
    #allocation3 [shape = 's32[2]{0}', space=sflag, size = 0x8, scoped, tag = 'scoped memory for tpu_custom_call.1']
    #allocation4 [shape = 's32[2]{0}', space=sflag, size = 0x8, scoped, tag = 'scoped memory for tpu_custom_call.1']
    #allocation5 [shape = 'u8[16384]{0}', space=vmem, size = 0x4000, scoped, tag = 'output window, operand 0']
    %7 = vsyncpa [#allocation3], 0
    %8 = vsyncpa [#allocation4], 0
    %s9 = scalar_lea.sflag [#allocation4], 1
    %10 = vsyncpa %s9, 0
    loop: start=0, step=1, limit=4
    $region2: #{tpu_custom_call.1} parent=1 // loop_pre_header
      _
    $region3: #{tpu_custom_call.1} parent=1 // loop_header
      %s12 = sphi 0, %s16
      %p13 = scmp.ge.s32.totalorder %s12, 4
      %s22 = sphi 0, %s24
      %s25 = sphi 0, %s22
      %s26 = sphi 0, %s25
      %s42 = sphi 0, %s26
      %s46 = sphi 0, %s46
      %s48 = sphi 0, %s46
      %s49 = sphi 0, %s48
      %s63 = sphi 0, %s49
      %s69 = sphi 0, %s71
      %s72 = sphi 0, %s69
      %s73 = sphi 0, %s72
      %s89 = sphi 0, %s73
    $region4: #{tpu_custom_call.1} parent=1 // loop_header_branch
      %15 = sbr.rel (%p13) target = $region8
    $region5: #{tpu_custom_call.1} parent=1 // loop_body
      %s17 = ssub.s32 %s12, 1
      %s18 = ssub.s32 %s12, 2
      %s19 = sadd.s32 %s12, 1
      %s20 = ssub.s32 %s12, %s19
      %p21 = scmp.eq.s32.totalorder %s20, 0
      %s23 = sadd.s32 %s22, 1
      %s24 = scalar_select %p21, %s22, %s23
      %p27 = pneg %p21
      %p28 = scmp.eq.s32.totalorder %s12, 1
      %p29 = por %p27, %p28
      %p30 = scmp.ne.s32.totalorder %s22, %s25
      %p31 = scmp.eq.s32.totalorder %s12, 0
      %p32 = por %p30, %p31
      %p33 = scmp.ne.s32.totalorder %s22, %s25
      %p34 = scmp.eq.s32.totalorder %s17, 1
      %p35 = por %p33, %p34
      %p36 = scmp.ne.s32.totalorder %s25, %s26
      %p37 = scmp.eq.s32.totalorder %s17, 0
      %p38 = por %p36, %p37
      %p39 = scmp.ne.s32.totalorder %s25, %s26
      %p40 = scmp.eq.s32.totalorder %s18, 1
      %p41 = por %p39, %p40
      %p43 = scmp.ne.s32.totalorder %s26, %s42
      %p44 = scmp.eq.s32.totalorder %s18, 0
      %p45 = por %p43, %p44
      %s47 = sadd.s32 %s46, 1
      %p50 = scmp.eq.s32.totalorder %s12, 1
      %p51 = scmp.ne.s32.totalorder %s46, %s48
      %p52 = scmp.eq.s32.totalorder %s12, 0
      %p53 = por %p51, %p52
      %p54 = scmp.ne.s32.totalorder %s46, %s48
      %p55 = scmp.eq.s32.totalorder %s17, 1
      %p56 = por %p54, %p55
      %p57 = scmp.ne.s32.totalorder %s48, %s49
      %p58 = scmp.eq.s32.totalorder %s17, 0
      %p59 = por %p57, %p58
      %p60 = scmp.ne.s32.totalorder %s48, %s49
      %p61 = scmp.eq.s32.totalorder %s18, 1
      %p62 = por %p60, %p61
      %p64 = scmp.ne.s32.totalorder %s49, %s63
      %p65 = scmp.eq.s32.totalorder %s18, 0
      %p66 = por %p64, %p65
      %s67 = ssub.s32 %s12, %s19
      %p68 = scmp.eq.s32.totalorder %s67, 0
      %s70 = sadd.s32 %s69, 1
      %s71 = scalar_select %p68, %s69, %s70
      %p74 = pneg %p68
      %p75 = scmp.eq.s32.totalorder %s12, 1
      %p76 = por %p74, %p75
      %p77 = scmp.ne.s32.totalorder %s69, %s72
      %p78 = scmp.eq.s32.totalorder %s12, 0
      %p79 = por %p77, %p78
      %p80 = scmp.ne.s32.totalorder %s69, %s72
      %p81 = scmp.eq.s32.totalorder %s17, 1
      %p82 = por %p80, %p81
      %p83 = scmp.ne.s32.totalorder %s72, %s73
      %p84 = scmp.eq.s32.totalorder %s17, 0
      %p85 = por %p83, %p84
      %p86 = scmp.ne.s32.totalorder %s72, %s73
      %p87 = scmp.eq.s32.totalorder %s18, 1
      %p88 = por %p86, %p87
      %p90 = scmp.ne.s32.totalorder %s73, %s89
      %p91 = scmp.eq.s32.totalorder %s18, 0
      %p92 = por %p90, %p91
      %p93 = scmp.le.s32.totalorder 1, %s12
      %p94 = scmp.lt.s32.totalorder %s12, 3
      %p95 = pnand %p93, %p94
      %p96 = pneg %p95
      // Predicated region
      $region9: #{tpu_custom_call.1} parent=5 // pred_check
        _
      $region10: #{tpu_custom_call.1} parent=5 // pred_check_branch
        %98 = sbr.rel (%p95) target = $region12
      $region11: #{tpu_custom_call.1} parent=5 // pred_region
        %s99 = ssub.s32 %s12, 1
        // Predicated region
        $region13: #{tpu_custom_call.1} parent=11 // pred_check
          %p100 = pneg %p59
        $region14: #{tpu_custom_call.1} parent=11 // pred_check_branch
          %102 = sbr.rel (%p100) target = $region16
        $region15: #{tpu_custom_call.1} parent=11 // pred_region
          %s104 = ssub.s32 2048, 2048
          %105 = vsyncadd [#allocation3], %s104
          %s106 = sshll.u32 [#allocation2], 4
          %s107 = int_to_ptr.vmem [resolvable:$true] %s106
          %112 = dma.hbm_to_vmem [thread:$0]  %s1, 2048, %s107, [#allocation3], 256, 256, 16
        $region16: #{tpu_custom_call.1} parent=11 // pred_fallthru
          _
      $region12: #{tpu_custom_call.1} parent=5 // pred_fallthru
        _
      %p113 = scmp.lt.s32.totalorder %s12, 2
      // Predicated region
      $region17: #{tpu_custom_call.1} parent=5 // pred_check
        %p114 = pneg %p113
      $region18: #{tpu_custom_call.1} parent=5 // pred_check_branch
        %116 = sbr.rel (%p114) target = $region20
      $region19: #{tpu_custom_call.1} parent=5 // pred_region
        // Predicated region
        $region21: #{tpu_custom_call.1} parent=19 // pred_check
          %p117 = pneg %p32
        $region22: #{tpu_custom_call.1} parent=19 // pred_check_branch
          %119 = sbr.rel (%p117) target = $region24
        $region23: #{tpu_custom_call.1} parent=19 // pred_region
          %p120 = scmp.lt.s32.totalorder %s12, 1
          %s121 = scalar_select %p120, %s12, 1
          %s122 = smul.addr %s121, 8
          %s123 = scalar_lea.vmem %s0, %s122
        $region24: #{tpu_custom_call.1} parent=19 // pred_fallthru
          _
      $region20: #{tpu_custom_call.1} parent=5 // pred_fallthru
        _
      %p124 = scmp.le.s32.totalorder 1, %s12
      %p125 = scmp.lt.s32.totalorder %s12, 3
      %p126 = pnand %p124, %p125
      %p127 = pneg %p126
      // Predicated region
      $region25: #{tpu_custom_call.1} parent=5 // pred_check
        _
      $region26: #{tpu_custom_call.1} parent=5 // pred_check_branch
        %129 = sbr.rel (%p126) target = $region28
      $region27: #{tpu_custom_call.1} parent=5 // pred_region
        %s130 = ssub.s32 %s12, 1
        // Predicated region
        $region29: #{tpu_custom_call.1} parent=27 // pred_check
          %p131 = pneg %p59
        $region30: #{tpu_custom_call.1} parent=27 // pred_check_branch
          %133 = sbr.rel (%p131) target = $region32
        $region31: #{tpu_custom_call.1} parent=27 // pred_region
          %134 = dma.done [#allocation3], 2048
        $region32: #{tpu_custom_call.1} parent=27 // pred_fallthru
          _
        %p135 = scmp.lt.s32.totalorder %s17, 1
        %s136 = scalar_select %p135, %s17, 1
        %s137 = smul.addr %s136, 8
        %s138 = scalar_lea.vmem %s0, %s137
        %p139 = pneg %p38
        %p140 = pneg %p35
        %p141 = pneg %p59
        %p142 = pneg %p56
        %p143 = pneg %p85
        %p144 = pneg %p82
        %s145 = sand.u32 %s72, 1
        %s146 = scalar_lea.sflag [#allocation4], %s145
        %s147 = sand.u32 %s72, 1
        %s148 = smul.addr %s147, 16
        %s149 = scalar_lea.vmem [#allocation5], %s148
        %p150 = scmp.lt.s32.totalorder %s17, 1
        %s151 = scalar_select %p150, %s17, 1
        %s152 = smul.addr %s151, 8
        %s153 = scalar_lea.vmem %s0, %s152
        %v154 = vld [vmem:[%s153] sm:$0xff]
        %v155 = vlaneseq
        %v156 = vand.u32 %v155, 127
        %157 = vset.pattern.permute.xlu0 0
        %158 = vperm.xlu0 %157, %v154
        %v159 = vpop.permute.xlu0 %158
        %vm160 = vcmp.eq.s32.totalorder %v159, %v156
        %v161 = vsel %vm160, 16.0, 0.0
        %v162 = vld [vmem:[#allocation2] sm:$0xff]
        %v163 = vld [vmem:[#allocation2 + $0x8] sm:$0xff]
        %v164 = vld [vmem:[#allocation2 + $0x10] sm:$0xff]
        %v165 = vld [vmem:[#allocation2 + $0x18] sm:$0xff]
        %v166 = vld [vmem:[#allocation2 + $0x20] sm:$0xff]
        %v167 = vld [vmem:[#allocation2 + $0x28] sm:$0xff]
        %v168 = vld [vmem:[#allocation2 + $0x30] sm:$0xff]
        %v169 = vld [vmem:[#allocation2 + $0x38] sm:$0xff]
        %v170 = vld [vmem:[#allocation2 + $0x40] sm:$0xff]
        %v171 = vld [vmem:[#allocation2 + $0x48] sm:$0xff]
        %v172 = vld [vmem:[#allocation2 + $0x50] sm:$0xff]
        %v173 = vld [vmem:[#allocation2 + $0x58] sm:$0xff]
        %v174 = vld [vmem:[#allocation2 + $0x60] sm:$0xff]
        %v175 = vld [vmem:[#allocation2 + $0x68] sm:$0xff]
        %v176 = vld [vmem:[#allocation2 + $0x70] sm:$0xff]
        %v177 = vld [vmem:[#allocation2 + $0x78] sm:$0xff]
        %vm178 = vcmask 523264
        %v180 = vsel %vm178, %v161, 0
        %182 = vmatprep.subr.mxu0 %v163
        %183 = vmatpush1.msra.mxu0 %v162
        %184 = vmatprep.subr.mxu0 %v165
        %185 = vmatpush1.msra.mxu0 %v164
        %186 = vmatprep.subr.mxu0 %v167
        %187 = vmatpush1.msra.mxu0 %v166
        %188 = vmatprep.subr.mxu0 %v169
        %189 = vmatpush1.msra.mxu0 %v168
        %190 = vmatprep.subr.mxu0 %v171
        %191 = vmatpush1.msra.mxu0 %v170
        %192 = vmatprep.subr.mxu0 %v173
        %193 = vmatpush1.msra.mxu0 %v172
        %194 = vmatprep.subr.mxu0 %v175
        %195 = vmatpush1.msra.mxu0 %v174
        %196 = vmatprep.subr.mxu0 %v177
        %197 = vmatpush1.msra.mxu0 %v176
        %198 = vmatprep.subr.mxu0 0.0
        %199 = vmatpush1.msra.mxu0 0.0
        %200 = vmatprep.subr.mxu0 0.0
        %201 = vmatpush1.msra.mxu0 0.0
        %202 = vmatprep.subr.mxu0 0.0
        %203 = vmatpush1.msra.mxu0 0.0
        %204 = vmatprep.subr.mxu0 0.0
        %205 = vmatpush1.msra.mxu0 0.0
        %206 = vmatprep.subr.mxu0 0.0
        %207 = vmatpush1.msra.mxu0 0.0
        %208 = vmatprep.subr.mxu0 0.0
        %209 = vmatpush1.msra.mxu0 0.0
        %210 = vmatprep.subr.mxu0 0.0
        %211 = vmatpush1.msra.mxu0 0.0
        %212 = vmatprep.subr.mxu0 0.0
        %213 = vmatpush1.msra.mxu0 0.0
        %214 = vmatprep.subr.mxu0 0.0
        %215 = vmatpush1.msra.mxu0 0.0
        %216 = vmatprep.subr.mxu0 0.0
        %217 = vmatpush1.msra.mxu0 0.0
        %218 = vmatprep.subr.mxu0 0.0
        %219 = vmatpush1.msra.mxu0 0.0
        %220 = vmatprep.subr.mxu0 0.0
        %221 = vmatpush1.msra.mxu0 0.0
        %222 = vmatprep.subr.mxu0 0.0
        %223 = vmatpush1.msra.mxu0 0.0
        %224 = vmatprep.subr.mxu0 0.0
        %225 = vmatpush1.msra.mxu0 0.0
        %226 = vmatprep.subr.mxu0 0.0
        %227 = vmatpush1.msra.mxu0 0.0
        %228 = vmatprep.subr.mxu0 0.0
        %229 = vmatpush1.msra.mxu0 0.0
        %230 = vmatprep.subr.mxu0 0.0
        %231 = vmatpush1.msra.mxu0 0.0
        %232 = vmatprep.subr.mxu0 0.0
        %233 = vmatpush1.msra.mxu0 0.0
        %234 = vmatprep.subr.mxu0 0.0
        %235 = vmatpush1.msra.mxu0 0.0
        %236 = vmatprep.subr.mxu0 0.0
        %237 = vmatpush1.msra.mxu0 0.0
        %238 = vmatprep.subr.mxu0 0.0
        %239 = vmatpush1.msra.mxu0 0.0
        %240 = vmatprep.subr.mxu0 0.0
        %241 = vmatpush1.msra.mxu0 0.0
        %242 = vmatprep.subr.mxu0 0.0
        %243 = vmatpush1.msra.mxu0 0.0
        %244 = vmatprep.subr.mxu0 0.0
        %245 = vmatpush1.msra.mxu0 0.0
        %246 = vmatprep.mubr.f32.mxu0 0.0
        %247 = vmatmul.mubr.f32.gmra.mrb[0].mxu0 %v180
        %v248 = vpop.f32.mrb[0].mxu0
        %v249 = vadd.f32 0.0, %v248
        %v250 = vpop.f32.mrb[0].mxu0
        %v251 = vadd.f32 0.0, %v250
        %252 = vdwg.mxu0
        %253 = vst [vmem:[%s149] sm:$0xff] %v249
        %254 = vst [vmem:[%s149 + $0x8] sm:$0xff] %v251
        %s255 = sand.u32 %s72, 1
        %s256 = scalar_lea.sflag [#allocation4], %s255
        %s257 = sand.u32 %s72, 1
        %s258 = smul.addr %s257, 16
        %s259 = scalar_lea.vmem [#allocation5], %s258
        // Predicated region
        $region33: #{tpu_custom_call.1} parent=27 // pred_check
          %p260 = pneg %p82
        $region34: #{tpu_custom_call.1} parent=27 // pred_check_branch
          %262 = sbr.rel (%p260) target = $region36
        $region35: #{tpu_custom_call.1} parent=27 // pred_region
          %s264 = ssub.s32 256, 256
          %265 = vsyncadd %s256, %s264
          %s266 = smul.addr %s17, 2
          %s267 = smul.addr %s266, 128
          %s268 = scalar_lea.hbm %s2, %s267
          %s270 = sshll.u32 %s259, 4
          %s271 = int_to_ptr.vmem [resolvable:$true] %s270
          %273 = dma.vmem_to_hbm [thread:$0]  %s271, 256, %s268, %s256
        $region36: #{tpu_custom_call.1} parent=27 // pred_fallthru
          _
      $region28: #{tpu_custom_call.1} parent=5 // pred_fallthru
        _
      %p274 = scmp.le.s32.totalorder 2, %s12
      // Predicated region
      $region37: #{tpu_custom_call.1} parent=5 // pred_check
        %p275 = pneg %p274
      $region38: #{tpu_custom_call.1} parent=5 // pred_check_branch
        %277 = sbr.rel (%p275) target = $region40
      $region39: #{tpu_custom_call.1} parent=5 // pred_region
        %s278 = ssub.s32 %s12, 2
        // Predicated region
        $region41: #{tpu_custom_call.1} parent=39 // pred_check
          %p279 = pneg %p88
        $region42: #{tpu_custom_call.1} parent=39 // pred_check_branch
          %281 = sbr.rel (%p279) target = $region44
        $region43: #{tpu_custom_call.1} parent=39 // pred_region
          %s282 = sand.u32 %s73, 1
          %s283 = scalar_lea.sflag [#allocation4], %s282
          %s284 = sand.u32 %s73, 1
          %s285 = smul.addr %s284, 16
          %s286 = scalar_lea.vmem [#allocation5], %s285
          %287 = dma.done %s283, 256
        $region44: #{tpu_custom_call.1} parent=39 // pred_fallthru
          _
      $region40: #{tpu_custom_call.1} parent=5 // pred_fallthru
        _
    $region6: #{tpu_custom_call.1} parent=1 // loop_footer
      %s16 = sadd.s32 1, %s12
    $region7: #{tpu_custom_call.1} parent=1 // loop_footer_branch
      %11 = sbr.rel target = $region3
    $region8: #{tpu_custom_call.1} parent=1 // loop_exit
      _
    %288 = vsyncpa [#allocation3], 1
    %s289 = scalar_lea.sflag [#allocation3], 1
    %290 = vsyncpa %s289, 1
    %291 = vsyncpa [#allocation4], 1
    %s292 = scalar_lea.sflag [#allocation4], 1
    %293 = vsyncpa %s292, 1

</llo_original>
